<compile_context>
chip_gen: v7x
topology: tpu7x:2x2x1
jax: 0.10.0
libtpu: 0.0.40
codegen_flags: <defaults>
</compile_context>

<pallas_src>
import jax
import jax.numpy as jnp
from jax.experimental import pallas as pl
from jax.experimental.pallas import tpu as pltpu


def _round_up(x, m):
    return (x + m - 1) // m * m


def flat_dqn_kernel(x_ref, w1_ref, b1_ref, w2_ref, b2_ref, w3_ref, b3_ref,
                    o_ref, xs_ref):
    """One batch tile: (TB, S) -> (TB, A). f32 accumulate, f32 bias/ReLU epilogue."""
    TB, S = x_ref.shape
    S_p = w1_ref.shape[0]

    if S == S_p:
        xin = x_ref[...]
    else:
        # Zero-extend K to the padded weight rows with explicit zeros, every
        # step (stateless -> correct under megacore sharding of the grid).
        xs_ref[:, S:] = jnp.zeros((TB, S_p - S), x_ref.dtype)
        xs_ref[:, :S] = x_ref[...]
        xin = xs_ref[...]

    # Layer 1: Linear + ReLU (MXU matmul, f32 accumulate, f32 epilogue)
    h = jnp.dot(xin, w1_ref[...], preferred_element_type=jnp.float32)
    h = jnp.maximum(h + b1_ref[...], 0.0)
    # Layer 2: Linear + ReLU
    h = jnp.dot(h.astype(w2_ref.dtype), w2_ref[...],
                preferred_element_type=jnp.float32)
    h = jnp.maximum(h + b2_ref[...], 0.0)
    # Layer 3: Linear (Q-values) -- true-A output block, masked narrow store.
    q = jnp.dot(h.astype(w3_ref.dtype), w3_ref[...],
                preferred_element_type=jnp.float32)
    o_ref[...] = (q + b3_ref[...]).astype(o_ref.dtype)


def prepare_params(params, compute_dtype=jnp.bfloat16):
    """Pad/cast weights once (outside the per-call path). params are [in,out]."""
    S, H = params["w1"].shape
    A = params["w3"].shape[1]
    S_p = _round_up(S, 128)
    H_p = _round_up(H, 128)

    def pad2(a, r, c):
        return jnp.pad(a, ((0, r - a.shape[0]), (0, c - a.shape[1])))

    # Zero-padding is semantics-preserving: padded hidden cols get zero weight
    # and zero bias -> ReLU(0)=0 -> multiplied by zero rows in the next layer.
    return dict(
        w1=pad2(params["w1"], S_p, H_p).astype(compute_dtype),
        b1=pad2(params["b1"], 1, H_p).astype(jnp.float32),
        w2=pad2(params["w2"], H_p, H_p).astype(compute_dtype),
        b2=pad2(params["b2"], 1, H_p).astype(jnp.float32),
        w3=pad2(params["w3"], H_p, A).astype(compute_dtype),
        b3=params["b3"].astype(jnp.float32),
        dims=(S, H, A, S_p, H_p),
        dtype=compute_dtype,
    )


def _choose_batch_tile(B, max_tile=1024, sublane=16):
    """Multiple of 16 (bf16 sublane tile); large, but >= 2 grid steps when possible."""
    B_r = _round_up(B, sublane)
    if B_r <= 2 * sublane:
        return B_r                                      # tiny batch: one step
    return min(max_tile, _round_up((B_r + 1) // 2, sublane))


def flat_dqn_forward(x, prepared, *, max_batch_tile=1024):
    """x: [B, S]. prepared: output of prepare_params. Returns [B, A] float32."""
    B, S = x.shape
    S_, H, A, S_p, H_p = prepared["dims"]
    assert S == S_, "state_shape mismatch with prepared params"
    dt = prepared["dtype"]
    itemsize = jnp.dtype(dt).itemsize

    TB = _choose_batch_tile(B, max_batch_tile)
    B_p = _round_up(B, TB)
    nb = B_p // TB

    x_in = x.astype(dt)
    if B_p != B:                      # only pad the (cheap) batch tail
        x_in = jnp.pad(x_in, ((0, B_p - B), (0, 0)))

    resident = lambda shape: pl.BlockSpec(shape, lambda i: (0, 0))

    # VMEM budget: resident weights (x2 for buffering slack) + streamed x/out
    # tiles + staging scratch + intermediate headroom; clamp to hw-safe range.
    weight_bytes = (S_p * H_p + H_p * H_p + H_p * A) * itemsize
    bias_bytes = (2 * H_p + A) * 4
    stream_bytes = 2 * (TB * S * itemsize + TB * A * 4)
    scratch_bytes = TB * S_p * itemsize + 2 * TB * H_p * 4
    est = 2 * (weight_bytes + bias_bytes) + stream_bytes + scratch_bytes
    vmem_limit = int(min(max(2 * est, 32 * 1024 * 1024), 64 * 1024 * 1024))

    out = pl.pallas_call(
        flat_dqn_kernel,
        out_shape=jax.ShapeDtypeStruct((B_p, A), jnp.float32),
        grid_spec=pltpu.PrefetchScalarGridSpec(
            num_scalar_prefetch=0,
            grid=(nb,),
            in_specs=[
                pl.BlockSpec((TB, S), lambda i: (i, 0)),   # x: batch-streamed, true S
                resident((S_p, H_p)), resident((1, H_p)),  # w1, b1 (resident)
                resident((H_p, H_p)), resident((1, H_p)),  # w2, b2 (resident)
                resident((H_p, A)),   resident((1, A)),    # w3, b3 (resident)
            ],
            out_specs=pl.BlockSpec((TB, A), lambda i: (i, 0)),
            scratch_shapes=[pltpu.VMEM((TB, S_p), dt)],    # K-padding staging
        ),
        compiler_params=pltpu.CompilerParams(
            dimension_semantics=("parallel",),   # batch axis across TCs on v7x
            vmem_limit_bytes=vmem_limit,
        ),
    )(x_in, prepared["w1"], prepared["b1"], prepared["w2"], prepared["b2"],
      prepared["w3"], prepared["b3"])

    return out[:B] if B_p != B else out


def init_params(key, state_shape, hidden_shape, num_actions):
    """Deterministic init matching torch.nn.Linear shapes (stored transposed [in,out])."""
    ks = jax.random.split(key, 6)

    def linear(kw, kb, fan_in, fan_out):
        bound = 1.0 / jnp.sqrt(fan_in)
        w = jax.random.uniform(kw, (fan_in, fan_out), jnp.float32, -bound, bound)
        b = jax.random.uniform(kb, (1, fan_out), jnp.float32, -bound, bound)
        return w, b

    w1, b1 = linear(ks[0], ks[1], state_shape, hidden_shape)
    w2, b2 = linear(ks[2], ks[3], hidden_shape, hidden_shape)
    w3, b3 = linear(ks[4], ks[5], hidden_shape, num_actions)
    return dict(w1=w1, b1=b1, w2=w2, b2=b2, w3=w3, b3=b3)


def flat_dqn_reference(x, p):
    h = jnp.maximum(x @ p["w1"] + p["b1"], 0.0)
    h = jnp.maximum(h @ p["w2"] + p["b2"], 0.0)
    return h @ p["w3"] + p["b3"]


if __name__ == "__main__":
    S, H, A = 16, 32, 4   # state_shape, hidden_shape, num_actions

    key = jax.random.PRNGKey(0)
    k_x, k_p, k_x2 = jax.random.split(key, 3)
    params = init_params(k_p, S, H, A)

    # --- f32 path: exact semantics check (small batch, single grid step) ---
    prep_f32 = prepare_params(params, compute_dtype=jnp.float32)
    B = 8
    x = jax.random.normal(k_x, (B, S), jnp.float32)
    out = jax.block_until_ready(flat_dqn_forward(x, prep_f32))
    ref = flat_dqn_reference(x, params)
    assert out.shape == (B, A)
    assert jnp.allclose(out, ref, atol=1e-4, rtol=1e-4), "f32 small-batch mismatch"

    # --- f32 path: non-tile-multiple batch -> 2 grid steps + batch tail pad ---
    B2 = 300
    x2 = jax.random.normal(k_x2, (B2, S), jnp.float32)
    out2 = jax.block_until_ready(flat_dqn_forward(x2, prep_f32))
    ref2 = flat_dqn_reference(x2, params)
    assert out2.shape == (B2, A)
    assert jnp.allclose(out2, ref2, atol=1e-4, rtol=1e-4), "f32 batched-grid mismatch"

    # --- bf16 operand path (default): f32 accumulation, looser tolerance ---
    prep_bf16 = prepare_params(params)          # default bfloat16
    out3 = jax.block_until_ready(flat_dqn_forward(x2, prep_bf16))
    assert out3.shape == (B2, A)
    assert jnp.allclose(out3, ref2, atol=1e-1, rtol=1e-1), "bf16 mismatch"

    print("KERNEL_OK")
</pallas_src>

<mosaic_0001>
module attributes {stable_mosaic.version = 11 : i64} {
  func.func @flat_dqn_kernel(%arg0: i32, %arg1: memref<16x16xf32, #tpu.memory_space<vmem>>, %arg2: memref<128x128xf32, #tpu.memory_space<vmem>>, %arg3: memref<1x128xf32, #tpu.memory_space<vmem>>, %arg4: memref<128x128xf32, #tpu.memory_space<vmem>>, %arg5: memref<1x128xf32, #tpu.memory_space<vmem>>, %arg6: memref<128x4xf32, #tpu.memory_space<vmem>>, %arg7: memref<1x4xf32, #tpu.memory_space<vmem>>, %arg8: memref<16x4xf32, #tpu.memory_space<vmem>>, %arg9: memref<16x128xf32, #tpu.memory_space<vmem>>) attributes {dimension_semantics = [#tpu.dimension_semantics<parallel>], iteration_bounds = array<i64: 1>, scalar_prefetch = 0 : i64, scratch_operands = 1 : i64, tpu.core_type = #tpu.core_type<tc>, window_params = [{transform_indices = @transform_0, window_bounds = array<i64: 16, 16>}, {pipeline_mode = #tpu.pipeline_mode<synchronous>, transform_indices = @transform_1, window_bounds = array<i64: 128, 128>}, {pipeline_mode = #tpu.pipeline_mode<synchronous>, transform_indices = @transform_2, window_bounds = array<i64: 1, 128>}, {pipeline_mode = #tpu.pipeline_mode<synchronous>, transform_indices = @transform_3, window_bounds = array<i64: 128, 128>}, {pipeline_mode = #tpu.pipeline_mode<synchronous>, transform_indices = @transform_4, window_bounds = array<i64: 1, 128>}, {pipeline_mode = #tpu.pipeline_mode<synchronous>, transform_indices = @transform_5, window_bounds = array<i64: 128, 4>}, {pipeline_mode = #tpu.pipeline_mode<synchronous>, transform_indices = @transform_6, window_bounds = array<i64: 1, 4>}, {transform_indices = @transform_7, window_bounds = array<i64: 16, 4>}]} {
    %cst = arith.constant 0.000000e+00 : f32
    %0 = vector.broadcast %cst : f32 to vector<16x112xf32>
    %c0 = arith.constant 0 : index
    %c16 = arith.constant 16 : index
    %1 = vector.load %arg9[%c0, %c16] : memref<16x128xf32, #tpu.memory_space<vmem>>, vector<16x112xf32>
    tpu.vector_store %arg9[%c0, %c16], %0 {strides = array<i32>} : memref<16x128xf32, #tpu.memory_space<vmem>>, vector<16x112xf32>,
    %c0_0 = arith.constant 0 : index
    %c0_1 = arith.constant 0 : index
    %2 = vector.load %arg1[%c0_0, %c0_1] : memref<16x16xf32, #tpu.memory_space<vmem>>, vector<16x16xf32>
    %c0_2 = arith.constant 0 : index
    %c0_3 = arith.constant 0 : index
    %3 = vector.load %arg9[%c0_2, %c0_3] : memref<16x128xf32, #tpu.memory_space<vmem>>, vector<16x16xf32>
    tpu.vector_store %arg9[%c0_2, %c0_3], %2 {strides = array<i32>} : memref<16x128xf32, #tpu.memory_space<vmem>>, vector<16x16xf32>,
    %c0_4 = arith.constant 0 : index
    %c0_5 = arith.constant 0 : index
    %4 = vector.load %arg9[%c0_4, %c0_5] : memref<16x128xf32, #tpu.memory_space<vmem>>, vector<16x128xf32>
    %c0_6 = arith.constant 0 : index
    %c0_7 = arith.constant 0 : index
    %5 = vector.load %arg2[%c0_6, %c0_7] : memref<128x128xf32, #tpu.memory_space<vmem>>, vector<128x128xf32>
    %cst_8 = arith.constant dense<0.000000e+00> : vector<16x128xf32>
    %6 = tpu.matmul %4, %5, %cst_8 {dimension_numbers = #tpu.dot_dimension_numbers<[1], [0], [0], [1], [0, 0, 1, 1], [], []>} : vector<16x128xf32>, vector<128x128xf32>, vector<16x128xf32> -> vector<16x128xf32>
    %c0_9 = arith.constant 0 : index
    %c0_10 = arith.constant 0 : index
    %7 = vector.load %arg3[%c0_9, %c0_10] : memref<1x128xf32, #tpu.memory_space<vmem>>, vector<1x128xf32>
    %8 = vector.broadcast %7 : vector<1x128xf32> to vector<16x128xf32>
    %9 = arith.addf %6, %8 : vector<16x128xf32>
    %cst_11 = arith.constant 0.000000e+00 : f32
    %10 = vector.broadcast %cst_11 : f32 to vector<16x128xf32>
    %11 = arith.maximumf %9, %10 : vector<16x128xf32>
    %c0_12 = arith.constant 0 : index
    %c0_13 = arith.constant 0 : index
    %12 = vector.load %arg4[%c0_12, %c0_13] : memref<128x128xf32, #tpu.memory_space<vmem>>, vector<128x128xf32>
    %cst_14 = arith.constant dense<0.000000e+00> : vector<16x128xf32>
    %13 = tpu.matmul %11, %12, %cst_14 {dimension_numbers = #tpu.dot_dimension_numbers<[1], [0], [0], [1], [0, 0, 1, 1], [], []>} : vector<16x128xf32>, vector<128x128xf32>, vector<16x128xf32> -> vector<16x128xf32>
    %c0_15 = arith.constant 0 : index
    %c0_16 = arith.constant 0 : index
    %14 = vector.load %arg5[%c0_15, %c0_16] : memref<1x128xf32, #tpu.memory_space<vmem>>, vector<1x128xf32>
    %15 = vector.broadcast %14 : vector<1x128xf32> to vector<16x128xf32>
    %16 = arith.addf %13, %15 : vector<16x128xf32>
    %cst_17 = arith.constant 0.000000e+00 : f32
    %17 = vector.broadcast %cst_17 : f32 to vector<16x128xf32>
    %18 = arith.maximumf %16, %17 : vector<16x128xf32>
    %c0_18 = arith.constant 0 : index
    %c0_19 = arith.constant 0 : index
    %19 = vector.load %arg6[%c0_18, %c0_19] : memref<128x4xf32, #tpu.memory_space<vmem>>, vector<128x4xf32>
    %cst_20 = arith.constant dense<0.000000e+00> : vector<16x4xf32>
    %20 = tpu.matmul %18, %19, %cst_20 {dimension_numbers = #tpu.dot_dimension_numbers<[1], [0], [0], [1], [0, 0, 1, 1], [], []>} : vector<16x128xf32>, vector<128x4xf32>, vector<16x4xf32> -> vector<16x4xf32>
    %c0_21 = arith.constant 0 : index
    %c0_22 = arith.constant 0 : index
    %21 = vector.load %arg7[%c0_21, %c0_22] : memref<1x4xf32, #tpu.memory_space<vmem>>, vector<1x4xf32>
    %22 = vector.broadcast %21 : vector<1x4xf32> to vector<16x4xf32>
    %23 = arith.addf %20, %22 : vector<16x4xf32>
    %c0_23 = arith.constant 0 : index
    %c0_24 = arith.constant 0 : index
    %24 = vector.load %arg8[%c0_23, %c0_24] : memref<16x4xf32, #tpu.memory_space<vmem>>, vector<16x4xf32>
    tpu.vector_store %arg8[%c0_23, %c0_24], %23 {strides = array<i32>} : memref<16x4xf32, #tpu.memory_space<vmem>>, vector<16x4xf32>,
    return
  }
  func.func @transform_0(%arg0: i32) -> (i32, i32) {
    %c0_i32 = arith.constant 0 : i32
    %c0_i32_0 = arith.constant 0 : i32
    return %arg0, %c0_i32 : i32, i32
  }
  func.func @transform_1(%arg0: i32) -> (i32, i32) {
    %c0_i32 = arith.constant 0 : i32
    %c0_i32_0 = arith.constant 0 : i32
    %c0_i32_1 = arith.constant 0 : i32
    return %c0_i32, %c0_i32_0 : i32, i32
  }
  func.func @transform_2(%arg0: i32) -> (i32, i32) {
    %c0_i32 = arith.constant 0 : i32
    %c0_i32_0 = arith.constant 0 : i32
    %c0_i32_1 = arith.constant 0 : i32
    return %c0_i32, %c0_i32_0 : i32, i32
  }
  func.func @transform_3(%arg0: i32) -> (i32, i32) {
    %c0_i32 = arith.constant 0 : i32
    %c0_i32_0 = arith.constant 0 : i32
    %c0_i32_1 = arith.constant 0 : i32
    return %c0_i32, %c0_i32_0 : i32, i32
  }
  func.func @transform_4(%arg0: i32) -> (i32, i32) {
    %c0_i32 = arith.constant 0 : i32
    %c0_i32_0 = arith.constant 0 : i32
    %c0_i32_1 = arith.constant 0 : i32
    return %c0_i32, %c0_i32_0 : i32, i32
  }
  func.func @transform_5(%arg0: i32) -> (i32, i32) {
    %c0_i32 = arith.constant 0 : i32
    %c0_i32_0 = arith.constant 0 : i32
    %c0_i32_1 = arith.constant 0 : i32
    return %c0_i32, %c0_i32_0 : i32, i32
  }
  func.func @transform_6(%arg0: i32) -> (i32, i32) {
    %c0_i32 = arith.constant 0 : i32
    %c0_i32_0 = arith.constant 0 : i32
    %c0_i32_1 = arith.constant 0 : i32
    return %c0_i32, %c0_i32_0 : i32, i32
  }
  func.func @transform_7(%arg0: i32) -> (i32, i32) {
    %c0_i32 = arith.constant 0 : i32
    %c0_i32_0 = arith.constant 0 : i32
    return %arg0, %c0_i32 : i32, i32
  }
}

</mosaic_0001>

<llo_original>
// kernel: tpu_custom_call.1
$region0: #{tpu_custom_call.1}
  #allocation0 [shape = 'u32[]', space=smem, size = 0x4, offset = 0x4, fixed_abs, tag = 'smem constant byte address 0x4 - core index']
  #allocation1 [shape = 'u32[144,128]{1,0:T(1,128)}', space=vmem, size = 0x12000, scoped, tag = 'internal scratch']
  #allocation2 [shape = 'f32[16,128]{1,0:T(8,128)}', space=vmem, size = 0x2000, scoped, tag = 'scratch operand']
  %s0 = inlined_call_operand.hbm [shape: f32[16,16], index: 0, kind: input, shape index: {}]
  %s1 = inlined_call_operand.vmem [shape: f32[128,128], index: 1, kind: input, shape index: {}]
  %s2 = inlined_call_operand.vmem [shape: f32[1,128], index: 2, kind: input, shape index: {}]
  %s3 = inlined_call_operand.hbm [shape: f32[128,128], index: 3, kind: input, shape index: {}]
  %s4 = inlined_call_operand.vmem [shape: f32[1,128], index: 4, kind: input, shape index: {}]
  %s5 = inlined_call_operand.vmem [shape: f32[128,4], index: 5, kind: input, shape index: {}]
  %s6 = inlined_call_operand.vmem [shape: f32[1,4], index: 6, kind: input, shape index: {}]
  %s7 = inlined_call_operand.vmem [shape: f32[16,4], index: 7, kind: output, shape index: {}]
  %s8 = sld [smem:[#allocation0]]
  $region46: #{tpu_custom_call.1} parent=0
    _
  %s10 = ssub.s32 1, %s8
  %s11 = scalar_select 0, %s10, %s8
  $region1: #{tpu_custom_call.1} parent=0
    #allocation3 [shape = 'u8[8192]{0}', space=vmem, size = 0x2000, scoped, tag = 'input window, operand 0, single buffered']
    #allocation4 [shape = 's32[1]{0}', space=sflag, size = 0x4, scoped, tag = 'scoped memory for tpu_custom_call.1']
    #allocation5 [shape = 'u8[65536]{0}', space=vmem, size = 0x10000, scoped, tag = 'input window, operand 3, single buffered']
    #allocation6 [shape = 's32[1]{0}', space=sflag, size = 0x4, scoped, tag = 'scoped memory for tpu_custom_call.1']
    %12 = vsyncpa [#allocation4], 0
    %13 = vsyncpa [#allocation6], 0
    // Predicated region
    $region2: #{tpu_custom_call.1} parent=1 // pred_check
      _
    $region3: #{tpu_custom_call.1} parent=1 // pred_check_branch
      %15 = sbr.rel (0) target = $region5
    $region4: #{tpu_custom_call.1} parent=1 // pred_region
      %s17 = ssub.s32 256, 256
      %18 = vsyncadd [#allocation4], %s17
      %s19 = sshll.u32 [#allocation3], 4
      %s20 = int_to_ptr.vmem [resolvable:$true] %s19
      %25 = dma.hbm_to_vmem [thread:$0]  %s0, 256, %s20, [#allocation4], 128, 128, 8
    $region5: #{tpu_custom_call.1} parent=1 // pred_fallthru
      _
    // Predicated region
    $region6: #{tpu_custom_call.1} parent=1 // pred_check
      _
    $region7: #{tpu_custom_call.1} parent=1 // pred_check_branch
      %27 = sbr.rel (0) target = $region9
    $region8: #{tpu_custom_call.1} parent=1 // pred_region
      _
    $region9: #{tpu_custom_call.1} parent=1 // pred_fallthru
      _
    // Predicated region
    $region10: #{tpu_custom_call.1} parent=1 // pred_check
      _
    $region11: #{tpu_custom_call.1} parent=1 // pred_check_branch
      %29 = sbr.rel (0) target = $region13
    $region12: #{tpu_custom_call.1} parent=1 // pred_region
      _
    $region13: #{tpu_custom_call.1} parent=1 // pred_fallthru
      _
    // Predicated region
    $region14: #{tpu_custom_call.1} parent=1 // pred_check
      _
    $region15: #{tpu_custom_call.1} parent=1 // pred_check_branch
      %31 = sbr.rel (0) target = $region17
    $region16: #{tpu_custom_call.1} parent=1 // pred_region
      %s33 = ssub.s32 2048, 2048
      %34 = vsyncadd [#allocation6], %s33
      %s35 = sshll.u32 [#allocation5], 4
      %s36 = int_to_ptr.vmem [resolvable:$true] %s35
      %41 = dma.hbm_to_vmem [thread:$0]  %s3, 2048, %s36, [#allocation6], 128, 128, 8
    $region17: #{tpu_custom_call.1} parent=1 // pred_fallthru
      _
    // Predicated region
    $region18: #{tpu_custom_call.1} parent=1 // pred_check
      _
    $region19: #{tpu_custom_call.1} parent=1 // pred_check_branch
      %43 = sbr.rel (0) target = $region21
    $region20: #{tpu_custom_call.1} parent=1 // pred_region
      _
    $region21: #{tpu_custom_call.1} parent=1 // pred_fallthru
      _
    // Predicated region
    $region22: #{tpu_custom_call.1} parent=1 // pred_check
      _
    $region23: #{tpu_custom_call.1} parent=1 // pred_check_branch
      %45 = sbr.rel (0) target = $region25
    $region24: #{tpu_custom_call.1} parent=1 // pred_region
      _
    $region25: #{tpu_custom_call.1} parent=1 // pred_fallthru
      _
    // Predicated region
    $region26: #{tpu_custom_call.1} parent=1 // pred_check
      _
    $region27: #{tpu_custom_call.1} parent=1 // pred_check_branch
      %47 = sbr.rel (0) target = $region29
    $region28: #{tpu_custom_call.1} parent=1 // pred_region
      _
    $region29: #{tpu_custom_call.1} parent=1 // pred_fallthru
      _
    // Predicated region
    $region30: #{tpu_custom_call.1} parent=1 // pred_check
      _
    $region31: #{tpu_custom_call.1} parent=1 // pred_check_branch
      %49 = sbr.rel (0) target = $region33
    $region32: #{tpu_custom_call.1} parent=1 // pred_region
      %50 = dma.done [#allocation4], 256
    $region33: #{tpu_custom_call.1} parent=1 // pred_fallthru
      _
    // Predicated region
    $region34: #{tpu_custom_call.1} parent=1 // pred_check
      _
    $region35: #{tpu_custom_call.1} parent=1 // pred_check_branch
      %52 = sbr.rel (0) target = $region37
    $region36: #{tpu_custom_call.1} parent=1 // pred_region
      %53 = dma.done [#allocation6], 2048
    $region37: #{tpu_custom_call.1} parent=1 // pred_fallthru
      _
    %vm54 = vcmask 1047680
    %55 = vst.msk [vmem:[#allocation2] sm:$0xff] %vm54, 0.0
    %56 = vst.msk [vmem:[#allocation2 + $0x8] sm:$0xff] %vm54, 0.0
    %v57 = vld [vmem:[#allocation3] sm:$0xff]
    %v58 = vld [vmem:[#allocation3 + $0x8] sm:$0xff]
    %vm59 = vcmask 130048
    %60 = vst.msk [vmem:[#allocation2] sm:$0xff] %vm59, %v57
    %61 = vst.msk [vmem:[#allocation2 + $0x8] sm:$0xff] %vm59, %v58
    %v62 = vld [vmem:[#allocation2] sm:$0xff]
    %v63 = vld [vmem:[#allocation2 + $0x8] sm:$0xff]
    %v64 = vld [vmem:[%s1] sm:$0xff]
    %v65 = vld [vmem:[%s1 + $0x8] sm:$0xff]
    %v66 = vld [vmem:[%s1 + $0x10] sm:$0xff]
    %v67 = vld [vmem:[%s1 + $0x18] sm:$0xff]
    %v68 = vld [vmem:[%s1 + $0x20] sm:$0xff]
    %v69 = vld [vmem:[%s1 + $0x28] sm:$0xff]
    %v70 = vld [vmem:[%s1 + $0x30] sm:$0xff]
    %v71 = vld [vmem:[%s1 + $0x38] sm:$0xff]
    %v72 = vld [vmem:[%s1 + $0x40] sm:$0xff]
    %v73 = vld [vmem:[%s1 + $0x48] sm:$0xff]
    %v74 = vld [vmem:[%s1 + $0x50] sm:$0xff]
    %v75 = vld [vmem:[%s1 + $0x58] sm:$0xff]
    %v76 = vld [vmem:[%s1 + $0x60] sm:$0xff]
    %v77 = vld [vmem:[%s1 + $0x68] sm:$0xff]
    %v78 = vld [vmem:[%s1 + $0x70] sm:$0xff]
    %v79 = vld [vmem:[%s1 + $0x78] sm:$0xff]
    %v80 = vld [vmem:[%s2] sm:$0x1]
    %v82 = vlaneseq
    %v83 = vshrl.u32 %v82, 7
    %v84 = vsub.s32 0, %v83
    %v85 = vrot.slane %v80, %v84
    %87 = vmatprep.subr.mxu0 0.0
    %88 = vmatpush1.msra.mxu0 %v64
    %89 = vmatprep.subr.mxu0 0.0
    %90 = vmatpush1.msra.mxu0 %v65
    %91 = vmatprep.subr.mxu0 0.0
    %92 = vmatpush1.msra.mxu0 %v66
    %93 = vmatprep.subr.mxu0 0.0
    %94 = vmatpush1.msra.mxu0 %v67
    %95 = vmatprep.subr.mxu0 0.0
    %96 = vmatpush1.msra.mxu0 %v68
    %97 = vmatprep.subr.mxu0 0.0
    %98 = vmatpush1.msra.mxu0 %v69
    %99 = vmatprep.subr.mxu0 0.0
    %100 = vmatpush1.msra.mxu0 %v70
    %101 = vmatprep.subr.mxu0 0.0
    %102 = vmatpush1.msra.mxu0 %v71
    %103 = vmatprep.subr.mxu0 0.0
    %104 = vmatpush1.msra.mxu0 %v72
    %105 = vmatprep.subr.mxu0 0.0
    %106 = vmatpush1.msra.mxu0 %v73
    %107 = vmatprep.subr.mxu0 0.0
    %108 = vmatpush1.msra.mxu0 %v74
    %109 = vmatprep.subr.mxu0 0.0
    %110 = vmatpush1.msra.mxu0 %v75
    %111 = vmatprep.subr.mxu0 0.0
    %112 = vmatpush1.msra.mxu0 %v76
    %113 = vmatprep.subr.mxu0 0.0
    %114 = vmatpush1.msra.mxu0 %v77
    %115 = vmatprep.subr.mxu0 0.0
    %116 = vmatpush1.msra.mxu0 %v78
    %117 = vmatprep.subr.mxu0 0.0
    %118 = vmatpush1.msra.mxu0 %v79
    %119 = vmatprep.subr.mxu0 0.0
    %120 = vmatpush1.msra.mxu0 0.0
    %121 = vmatprep.subr.mxu0 0.0
    %122 = vmatpush1.msra.mxu0 0.0
    %123 = vmatprep.subr.mxu0 0.0
    %124 = vmatpush1.msra.mxu0 0.0
    %125 = vmatprep.subr.mxu0 0.0
    %126 = vmatpush1.msra.mxu0 0.0
    %127 = vmatprep.subr.mxu0 0.0
    %128 = vmatpush1.msra.mxu0 0.0
    %129 = vmatprep.subr.mxu0 0.0
    %130 = vmatpush1.msra.mxu0 0.0
    %131 = vmatprep.subr.mxu0 0.0
    %132 = vmatpush1.msra.mxu0 0.0
    %133 = vmatprep.subr.mxu0 0.0
    %134 = vmatpush1.msra.mxu0 0.0
    %135 = vmatprep.subr.mxu0 0.0
    %136 = vmatpush1.msra.mxu0 0.0
    %137 = vmatprep.subr.mxu0 0.0
    %138 = vmatpush1.msra.mxu0 0.0
    %139 = vmatprep.subr.mxu0 0.0
    %140 = vmatpush1.msra.mxu0 0.0
    %141 = vmatprep.subr.mxu0 0.0
    %142 = vmatpush1.msra.mxu0 0.0
    %143 = vmatprep.subr.mxu0 0.0
    %144 = vmatpush1.msra.mxu0 0.0
    %145 = vmatprep.subr.mxu0 0.0
    %146 = vmatpush1.msra.mxu0 0.0
    %147 = vmatprep.subr.mxu0 0.0
    %148 = vmatpush1.msra.mxu0 0.0
    %149 = vmatprep.subr.mxu0 0.0
    %150 = vmatpush1.msra.mxu0 0.0
    %151 = vmatprep.mubr.f32.mxu0 0.0
    %152 = vmatmul.mubr.f32.gmra.mrb[0].mxu0 %v62
    %v153 = vpop.f32.mrb[0].mxu0
    %v154 = vadd.f32 %v85, %v153
    %v155 = vpop.f32.mrb[0].mxu0
    %156 = vmatprep.mubr.f32.mxu0 0.0
    %157 = vmatmul.mubr.f32.gmra.mrb[0].mxu0 %v63
    %v158 = vpop.f32.mrb[0].mxu0
    %v159 = vadd.f32 %v85, %v158
    %v160 = vpop.f32.mrb[0].mxu0
    %161 = vdwg.mxu0
    %v162 = vmax.f32 %v154, 0.0
    %v163 = vmax.f32 %v159, 0.0
    %v164 = vld [vmem:[#allocation5] sm:$0xff]
    %v165 = vld [vmem:[#allocation5 + $0x8] sm:$0xff]
    %v166 = vld [vmem:[#allocation5 + $0x10] sm:$0xff]
    %v167 = vld [vmem:[#allocation5 + $0x18] sm:$0xff]
    %v168 = vld [vmem:[#allocation5 + $0x20] sm:$0xff]
    %v169 = vld [vmem:[#allocation5 + $0x28] sm:$0xff]
    %v170 = vld [vmem:[#allocation5 + $0x30] sm:$0xff]
    %v171 = vld [vmem:[#allocation5 + $0x38] sm:$0xff]
    %v172 = vld [vmem:[#allocation5 + $0x40] sm:$0xff]
    %v173 = vld [vmem:[#allocation5 + $0x48] sm:$0xff]
    %v174 = vld [vmem:[#allocation5 + $0x50] sm:$0xff]
    %v175 = vld [vmem:[#allocation5 + $0x58] sm:$0xff]
    %v176 = vld [vmem:[#allocation5 + $0x60] sm:$0xff]
    %v177 = vld [vmem:[#allocation5 + $0x68] sm:$0xff]
    %v178 = vld [vmem:[#allocation5 + $0x70] sm:$0xff]
    %v179 = vld [vmem:[#allocation5 + $0x78] sm:$0xff]
    %v180 = vld [vmem:[%s4] sm:$0x1]
    %v182 = vlaneseq
    %v183 = vshrl.u32 %v182, 7
    %v184 = vsub.s32 0, %v183
    %v185 = vrot.slane %v180, %v184
    %187 = vmatprep.subr.mxu0 0.0
    %188 = vmatpush1.msra.mxu0 %v164
    %189 = vmatprep.subr.mxu0 0.0
    %190 = vmatpush1.msra.mxu0 %v165
    %191 = vmatprep.subr.mxu0 0.0
    %192 = vmatpush1.msra.mxu0 %v166
    %193 = vmatprep.subr.mxu0 0.0
    %194 = vmatpush1.msra.mxu0 %v167
    %195 = vmatprep.subr.mxu0 0.0
    %196 = vmatpush1.msra.mxu0 %v168
    %197 = vmatprep.subr.mxu0 0.0
    %198 = vmatpush1.msra.mxu0 %v169
    %199 = vmatprep.subr.mxu0 0.0
    %200 = vmatpush1.msra.mxu0 %v170
    %201 = vmatprep.subr.mxu0 0.0
    %202 = vmatpush1.msra.mxu0 %v171
    %203 = vmatprep.subr.mxu0 0.0
    %204 = vmatpush1.msra.mxu0 %v172
    %205 = vmatprep.subr.mxu0 0.0
    %206 = vmatpush1.msra.mxu0 %v173
    %207 = vmatprep.subr.mxu0 0.0
    %208 = vmatpush1.msra.mxu0 %v174
    %209 = vmatprep.subr.mxu0 0.0
    %210 = vmatpush1.msra.mxu0 %v175
    %211 = vmatprep.subr.mxu0 0.0
    %212 = vmatpush1.msra.mxu0 %v176
    %213 = vmatprep.subr.mxu0 0.0
    %214 = vmatpush1.msra.mxu0 %v177
    %215 = vmatprep.subr.mxu0 0.0
    %216 = vmatpush1.msra.mxu0 %v178
    %217 = vmatprep.subr.mxu0 0.0
    %218 = vmatpush1.msra.mxu0 %v179
    %219 = vmatprep.subr.mxu0 0.0
    %220 = vmatpush1.msra.mxu0 0.0
    %221 = vmatprep.subr.mxu0 0.0
    %222 = vmatpush1.msra.mxu0 0.0
    %223 = vmatprep.subr.mxu0 0.0
    %224 = vmatpush1.msra.mxu0 0.0
    %225 = vmatprep.subr.mxu0 0.0
    %226 = vmatpush1.msra.mxu0 0.0
    %227 = vmatprep.subr.mxu0 0.0
    %228 = vmatpush1.msra.mxu0 0.0
    %229 = vmatprep.subr.mxu0 0.0
    %230 = vmatpush1.msra.mxu0 0.0
    %231 = vmatprep.subr.mxu0 0.0
    %232 = vmatpush1.msra.mxu0 0.0
    %233 = vmatprep.subr.mxu0 0.0
    %234 = vmatpush1.msra.mxu0 0.0
    %235 = vmatprep.subr.mxu0 0.0
    %236 = vmatpush1.msra.mxu0 0.0
    %237 = vmatprep.subr.mxu0 0.0
    %238 = vmatpush1.msra.mxu0 0.0
    %239 = vmatprep.subr.mxu0 0.0
    %240 = vmatpush1.msra.mxu0 0.0
    %241 = vmatprep.subr.mxu0 0.0
    %242 = vmatpush1.msra.mxu0 0.0
    %243 = vmatprep.subr.mxu0 0.0
    %244 = vmatpush1.msra.mxu0 0.0
    %245 = vmatprep.subr.mxu0 0.0
    %246 = vmatpush1.msra.mxu0 0.0
    %247 = vmatprep.subr.mxu0 0.0
    %248 = vmatpush1.msra.mxu0 0.0
    %249 = vmatprep.subr.mxu0 0.0
    %250 = vmatpush1.msra.mxu0 0.0
    %251 = vmatprep.mubr.f32.mxu0 0.0
    %252 = vmatmul.mubr.f32.gmra.mrb[0].mxu0 %v162
    %v253 = vpop.f32.mrb[0].mxu0
    %v254 = vadd.f32 %v185, %v253
    %v255 = vpop.f32.mrb[0].mxu0
    %256 = vmatprep.mubr.f32.mxu0 0.0
    %257 = vmatmul.mubr.f32.gmra.mrb[0].mxu0 %v163
    %v258 = vpop.f32.mrb[0].mxu0
    %v259 = vadd.f32 %v185, %v258
    %v260 = vpop.f32.mrb[0].mxu0
    %261 = vdwg.mxu0
    %v262 = vmax.f32 %v254, 0.0
    %v263 = vmax.f32 %v259, 0.0
    %v264 = vld [vmem:[%s5] sm:$0xff]
    %v265 = vld [vmem:[%s5 + $0x8] sm:$0xff]
    %v266 = vld [vmem:[%s5 + $0x10] sm:$0xff]
    %v267 = vld [vmem:[%s5 + $0x18] sm:$0xff]
    %v268 = vld [vmem:[%s5 + $0x20] sm:$0xff]
    %v269 = vld [vmem:[%s5 + $0x28] sm:$0xff]
    %v270 = vld [vmem:[%s5 + $0x30] sm:$0xff]
    %v271 = vld [vmem:[%s5 + $0x38] sm:$0xff]
    %v272 = vld [vmem:[%s5 + $0x40] sm:$0xff]
    %v273 = vld [vmem:[%s5 + $0x48] sm:$0xff]
    %v274 = vld [vmem:[%s5 + $0x50] sm:$0xff]
    %v275 = vld [vmem:[%s5 + $0x58] sm:$0xff]
    %v276 = vld [vmem:[%s5 + $0x60] sm:$0xff]
    %v277 = vld [vmem:[%s5 + $0x68] sm:$0xff]
    %v278 = vld [vmem:[%s5 + $0x70] sm:$0xff]
    %v279 = vld [vmem:[%s5 + $0x78] sm:$0xff]
    %v280 = vld [vmem:[%s6] sm:$0x1]
    %v282 = vlaneseq
    %v283 = vshrl.u32 %v282, 7
    %v284 = vsub.s32 0, %v283
    %v285 = vrot.slane %v280, %v284
    %287 = vmatprep.subr.mxu0 0.0
    %288 = vmatpush1.msra.mxu0 %v264
    %289 = vmatprep.subr.mxu0 0.0
    %290 = vmatpush1.msra.mxu0 %v265
    %291 = vmatprep.subr.mxu0 0.0
    %292 = vmatpush1.msra.mxu0 %v266
    %293 = vmatprep.subr.mxu0 0.0
    %294 = vmatpush1.msra.mxu0 %v267
    %295 = vmatprep.subr.mxu0 0.0
    %296 = vmatpush1.msra.mxu0 %v268
    %297 = vmatprep.subr.mxu0 0.0
    %298 = vmatpush1.msra.mxu0 %v269
    %299 = vmatprep.subr.mxu0 0.0
    %300 = vmatpush1.msra.mxu0 %v270
    %301 = vmatprep.subr.mxu0 0.0
    %302 = vmatpush1.msra.mxu0 %v271
    %303 = vmatprep.subr.mxu0 0.0
    %304 = vmatpush1.msra.mxu0 %v272
    %305 = vmatprep.subr.mxu0 0.0
    %306 = vmatpush1.msra.mxu0 %v273
    %307 = vmatprep.subr.mxu0 0.0
    %308 = vmatpush1.msra.mxu0 %v274
    %309 = vmatprep.subr.mxu0 0.0
    %310 = vmatpush1.msra.mxu0 %v275
    %311 = vmatprep.subr.mxu0 0.0
    %312 = vmatpush1.msra.mxu0 %v276
    %313 = vmatprep.subr.mxu0 0.0
    %314 = vmatpush1.msra.mxu0 %v277
    %315 = vmatprep.subr.mxu0 0.0
    %316 = vmatpush1.msra.mxu0 %v278
    %317 = vmatprep.subr.mxu0 0.0
    %318 = vmatpush1.msra.mxu0 %v279
    %319 = vmatprep.subr.mxu0 0.0
    %320 = vmatpush1.msra.mxu0 0.0
    %321 = vmatprep.subr.mxu0 0.0
    %322 = vmatpush1.msra.mxu0 0.0
    %323 = vmatprep.subr.mxu0 0.0
    %324 = vmatpush1.msra.mxu0 0.0
    %325 = vmatprep.subr.mxu0 0.0
    %326 = vmatpush1.msra.mxu0 0.0
    %327 = vmatprep.subr.mxu0 0.0
    %328 = vmatpush1.msra.mxu0 0.0
    %329 = vmatprep.subr.mxu0 0.0
    %330 = vmatpush1.msra.mxu0 0.0
    %331 = vmatprep.subr.mxu0 0.0
    %332 = vmatpush1.msra.mxu0 0.0
    %333 = vmatprep.subr.mxu0 0.0
    %334 = vmatpush1.msra.mxu0 0.0
    %335 = vmatprep.subr.mxu0 0.0
    %336 = vmatpush1.msra.mxu0 0.0
    %337 = vmatprep.subr.mxu0 0.0
    %338 = vmatpush1.msra.mxu0 0.0
    %339 = vmatprep.subr.mxu0 0.0
    %340 = vmatpush1.msra.mxu0 0.0
    %341 = vmatprep.subr.mxu0 0.0
    %342 = vmatpush1.msra.mxu0 0.0
    %343 = vmatprep.subr.mxu0 0.0
    %344 = vmatpush1.msra.mxu0 0.0
    %345 = vmatprep.subr.mxu0 0.0
    %346 = vmatpush1.msra.mxu0 0.0
    %347 = vmatprep.subr.mxu0 0.0
    %348 = vmatpush1.msra.mxu0 0.0
    %349 = vmatprep.subr.mxu0 0.0
    %350 = vmatpush1.msra.mxu0 0.0
    %351 = vmatprep.mubr.f32.mxu0 0.0
    %352 = vmatmul.mubr.f32.gmra.mrb[0].mxu0 %v262
    %v353 = vpop.f32.mrb[0].mxu0
    %v354 = vadd.f32 %v285, %v353
    %v355 = vpop.f32.mrb[0].mxu0
    %356 = vmatprep.mubr.f32.mxu0 0.0
    %357 = vmatmul.mubr.f32.gmra.mrb[0].mxu0 %v263
    %v358 = vpop.f32.mrb[0].mxu0
    %v359 = vadd.f32 %v285, %v358
    %v360 = vpop.f32.mrb[0].mxu0
    %361 = vdwg.mxu0
    %vm362 = vcmask 31744
    %363 = vst.msk [vmem:[%s7] sm:$0xff] %vm362, %v354
    %364 = vst.msk [vmem:[%s7 + $0x8] sm:$0xff] %vm362, %v359
    // Predicated region
    $region38: #{tpu_custom_call.1} parent=1 // pred_check
      _
    $region39: #{tpu_custom_call.1} parent=1 // pred_check_branch
      %366 = sbr.rel (0) target = $region41
    $region40: #{tpu_custom_call.1} parent=1 // pred_region
      _
    $region41: #{tpu_custom_call.1} parent=1 // pred_fallthru
      _
    // Predicated region
    $region42: #{tpu_custom_call.1} parent=1 // pred_check
      _
    $region43: #{tpu_custom_call.1} parent=1 // pred_check_branch
      %368 = sbr.rel (0) target = $region45
    $region44: #{tpu_custom_call.1} parent=1 // pred_region
      _
    $region45: #{tpu_custom_call.1} parent=1 // pred_fallthru
      _
    %369 = vsyncpa [#allocation4], 1
    %370 = vsyncpa [#allocation6], 1

</llo_original>
